<compile_context>
chip_gen: v6e
topology: v6e:2x2x1
jax: 0.10.0
libtpu: 0.0.40
codegen_flags: <defaults>
</compile_context>

<pallas_src>
import jax
import jax.numpy as jnp
from jax.experimental import pallas as pl
from jax.experimental.pallas import tpu as pltpu


def _memory_reformulator_kernel(rel_ref, wt_ref, b_ref, mem_ref, out_ref):
    """Single grid point: projection + softmax + fused all-hop matmul.

    rel_ref : [B, E]       input embeddings
    wt_ref  : [E, R]       projection weight, pre-transposed in the wrapper
    b_ref   : [1, R]       projection bias
    mem_ref : [R, H*E]     all hop memories, hop-major along the lane axis
    out_ref : [B, H*E]     fused result; wrapper reshapes to [H, B, E]
    """
    # attn_logits = rel @ W^T + b   -> [B, R]   (W already transposed outside)
    logits = jnp.dot(
        rel_ref[...], wt_ref[...], preferred_element_type=jnp.float32
    ) + b_ref[...]  # bias broadcasts over batch

    # softmax over the rules axis (PyTorch dim=1)
    m = jnp.max(logits, axis=-1, keepdims=True)
    e = jnp.exp(logits - m)
    attn = e * pl.reciprocal(jnp.sum(e, axis=-1, keepdims=True), approx=True)

    # res (all hops at once) = attn[B,R] @ mem[R, H*E] -> [B, H*E]
    out_ref[...] = jnp.dot(
        attn, mem_ref[...], preferred_element_type=jnp.float32
    ).astype(out_ref.dtype)


@jax.jit
def memory_reformulator_forward(rel, proj_w, proj_b, memory_stack):
    """rel: [B, E], proj_w: [R, E], proj_b: [R], memory_stack: [H, R, E] -> [H, B, E]."""
    B, E = rel.shape
    R = proj_w.shape[0]
    H = memory_stack.shape[0]

    # Layout plumbing done once in XLA (free at these sizes):
    wt = proj_w.T                                   # [E, R]
    b2 = proj_b.reshape(1, R)                       # [1, R]
    mem_flat = jnp.transpose(memory_stack, (1, 0, 2)).reshape(R, H * E)  # [R, H*E]

    vmem = pl.BlockSpec(memory_space=pltpu.MemorySpace.VMEM)
    out_flat = pl.pallas_call(
        _memory_reformulator_kernel,
        out_shape=jax.ShapeDtypeStruct((B, H * E), rel.dtype),
        in_specs=[vmem, vmem, vmem, vmem],
        out_specs=vmem,
    )(rel, wt, b2, mem_flat)

    # [B, H*E] -> [H, B, E]
    return jnp.transpose(out_flat.reshape(B, H, E), (1, 0, 2))


def reference_forward(rel, proj_w, proj_b, memory_stack):
    logits = rel @ proj_w.T + proj_b
    attn = jax.nn.softmax(logits, axis=1)
    return jnp.stack(
        [attn @ memory_stack[h] for h in range(memory_stack.shape[0])], axis=0
    )


if __name__ == "__main__":
    # Deterministic synthetic parameters (module __init__ shapes):
    #   Memory(nb_hops=3, nb_rules=16, embedding_size=32), uniform init in [-1, 1]
    #   projection = nn.Linear(embedding_size=32, nb_rules=16)
    nb_hops, nb_rules, embedding_size = 3, 16, 32
    batch = 8

    key = jax.random.PRNGKey(0)
    k_rel, k_mem, k_w, k_b = jax.random.split(key, 4)

    rel = jax.random.normal(k_rel, (batch, embedding_size), dtype=jnp.float32)
    memory_stack = jax.random.uniform(
        k_mem, (nb_hops, nb_rules, embedding_size), dtype=jnp.float32,
        minval=-1.0, maxval=1.0,
    )
    # nn.Linear default init: uniform(-1/sqrt(fan_in), 1/sqrt(fan_in))
    bound = 1.0 / (embedding_size ** 0.5)
    proj_w = jax.random.uniform(
        k_w, (nb_rules, embedding_size), dtype=jnp.float32, minval=-bound, maxval=bound,
    )
    proj_b = jax.random.uniform(
        k_b, (nb_rules,), dtype=jnp.float32, minval=-bound, maxval=bound,
    )

    out = memory_reformulator_forward(rel, proj_w, proj_b, memory_stack)
    out = jax.block_until_ready(out)

    ref = reference_forward(rel, proj_w, proj_b, memory_stack)
    assert out.shape == (nb_hops, batch, embedding_size)
    # Tolerance relaxed slightly for the EUP approx reciprocal in the softmax denom.
    assert jnp.allclose(out, ref, atol=1e-3, rtol=1e-3), "mismatch vs reference"

    # List-of-tensors result, matching the PyTorch forward's return type.
    res_list = [out[h] for h in range(nb_hops)]
    assert len(res_list) == nb_hops and res_list[0].shape == (batch, embedding_size)

    print("KERNEL_OK")
</pallas_src>

<mosaic_0001>
module attributes {stable_mosaic.version = 11 : i64} {
  func.func @_memory_reformulator_kernel(%arg0: memref<8x32xf32, #tpu.memory_space<vmem>>, %arg1: memref<32x16xf32, #tpu.memory_space<vmem>>, %arg2: memref<1x16xf32, #tpu.memory_space<vmem>>, %arg3: memref<16x96xf32, #tpu.memory_space<vmem>>, %arg4: memref<8x96xf32, #tpu.memory_space<vmem>>) attributes {dimension_semantics = [], scalar_prefetch = 0 : i64, scratch_operands = 0 : i64, tpu.core_type = #tpu.core_type<tc>} {
    %c0 = arith.constant 0 : index
    %c0_0 = arith.constant 0 : index
    %0 = vector.load %arg0[%c0, %c0_0] : memref<8x32xf32, #tpu.memory_space<vmem>>, vector<8x32xf32>
    %c0_1 = arith.constant 0 : index
    %c0_2 = arith.constant 0 : index
    %1 = vector.load %arg1[%c0_1, %c0_2] : memref<32x16xf32, #tpu.memory_space<vmem>>, vector<32x16xf32>
    %cst = arith.constant dense<0.000000e+00> : vector<8x16xf32>
    %2 = tpu.matmul %0, %1, %cst {dimension_numbers = #tpu.dot_dimension_numbers<[1], [0], [0], [1], [0, 0, 1, 1], [], []>} : vector<8x32xf32>, vector<32x16xf32>, vector<8x16xf32> -> vector<8x16xf32>
    %c0_3 = arith.constant 0 : index
    %c0_4 = arith.constant 0 : index
    %3 = vector.load %arg2[%c0_3, %c0_4] : memref<1x16xf32, #tpu.memory_space<vmem>>, vector<1x16xf32>
    %4 = vector.broadcast %3 : vector<1x16xf32> to vector<8x16xf32>
    %5 = arith.addf %2, %4 : vector<8x16xf32>
    %cst_5 = arith.constant dense<0xFF800000> : vector<8xf32>
    %6 = vector.multi_reduction <maximumf>, %5, %cst_5 [1] : vector<8x16xf32> to vector<8xf32>
    %7 = vector.shape_cast %6 : vector<8xf32> to vector<8x1xf32>
    %8 = vector.broadcast %7 : vector<8x1xf32> to vector<8x16xf32>
    %9 = arith.subf %5, %8 : vector<8x16xf32>
    %10 = math.exp %9 : vector<8x16xf32>
    %cst_6 = arith.constant dense<0.000000e+00> : vector<8xf32>
    %11 = vector.multi_reduction <add>, %10, %cst_6 [1] : vector<8x16xf32> to vector<8xf32>
    %12 = vector.shape_cast %11 : vector<8xf32> to vector<8x1xf32>
    %13 = tpu.reciprocal %12 {approx = true} : vector<8x1xf32> -> vector<8x1xf32>
    %14 = vector.broadcast %13 : vector<8x1xf32> to vector<8x16xf32>
    %15 = arith.mulf %10, %14 : vector<8x16xf32>
    %c0_7 = arith.constant 0 : index
    %c0_8 = arith.constant 0 : index
    %16 = vector.load %arg3[%c0_7, %c0_8] : memref<16x96xf32, #tpu.memory_space<vmem>>, vector<16x96xf32>
    %cst_9 = arith.constant dense<0.000000e+00> : vector<8x96xf32>
    %17 = tpu.matmul %15, %16, %cst_9 {dimension_numbers = #tpu.dot_dimension_numbers<[1], [0], [0], [1], [0, 0, 1, 1], [], []>} : vector<8x16xf32>, vector<16x96xf32>, vector<8x96xf32> -> vector<8x96xf32>
    %c0_10 = arith.constant 0 : index
    %c0_11 = arith.constant 0 : index
    %18 = vector.load %arg4[%c0_10, %c0_11] : memref<8x96xf32, #tpu.memory_space<vmem>>, vector<8x96xf32>
    tpu.vector_store %arg4[%c0_10, %c0_11], %17 {strides = array<i32>} : memref<8x96xf32, #tpu.memory_space<vmem>>, vector<8x96xf32>,
    return
  }
}

</mosaic_0001>

<llo_original>
// kernel: memory_reformulator_forward.1
$region0: #{memory_reformulator_forward.1}
  #allocation0 [shape = 'u32[]', space=smem, size = 0x4, offset = 0x4, fixed_abs, tag = 'smem constant byte address 0x4 - core index']
  #allocation1 [shape = 'u32[144,128]{1,0:T(1,128)}', space=vmem, size = 0x12000, scoped, tag = 'internal scratch']
  %s0 = inlined_call_operand.vmem [shape: f32[8,32], index: 0, kind: input, shape index: {}]
  %s1 = inlined_call_operand.vmem [shape: f32[32,16], index: 1, kind: input, shape index: {}]
  %s2 = inlined_call_operand.vmem [shape: f32[1,16], index: 2, kind: input, shape index: {}]
  %s3 = inlined_call_operand.vmem [shape: f32[16,96], index: 3, kind: input, shape index: {}]
  %s4 = inlined_call_operand.vmem [shape: f32[8,96], index: 4, kind: output, shape index: {}]
  %s5 = sld [smem:[#allocation0]]
  $region26: #{memory_reformulator_forward.1} parent=0
    _
  %s7 = ssub.s32 1, %s5
  %s8 = scalar_select 0, %s7, %s5
  // Predicated region
  $region2: #{memory_reformulator_forward.1} parent=0 // pred_check
    _
  $region3: #{memory_reformulator_forward.1} parent=0 // pred_check_branch
    %10 = sbr.rel (0) target = $region5
  $region4: #{memory_reformulator_forward.1} parent=0 // pred_region
    _
  $region5: #{memory_reformulator_forward.1} parent=0 // pred_fallthru
    _
  // Predicated region
  $region6: #{memory_reformulator_forward.1} parent=0 // pred_check
    _
  $region7: #{memory_reformulator_forward.1} parent=0 // pred_check_branch
    %12 = sbr.rel (0) target = $region9
  $region8: #{memory_reformulator_forward.1} parent=0 // pred_region
    _
  $region9: #{memory_reformulator_forward.1} parent=0 // pred_fallthru
    _
  // Predicated region
  $region10: #{memory_reformulator_forward.1} parent=0 // pred_check
    _
  $region11: #{memory_reformulator_forward.1} parent=0 // pred_check_branch
    %14 = sbr.rel (0) target = $region13
  $region12: #{memory_reformulator_forward.1} parent=0 // pred_region
    _
  $region13: #{memory_reformulator_forward.1} parent=0 // pred_fallthru
    _
  // Predicated region
  $region14: #{memory_reformulator_forward.1} parent=0 // pred_check
    _
  $region15: #{memory_reformulator_forward.1} parent=0 // pred_check_branch
    %16 = sbr.rel (0) target = $region17
  $region16: #{memory_reformulator_forward.1} parent=0 // pred_region
    _
  $region17: #{memory_reformulator_forward.1} parent=0 // pred_fallthru
    _
  %v17 = vld [vmem:[%s0] sm:$0xff]
  %v18 = vld [vmem:[%s1] sm:$0xff]
  %v19 = vld [vmem:[%s1 + $0x8] sm:$0xff]
  %v20 = vld [vmem:[%s1 + $0x10] sm:$0xff]
  %v21 = vld [vmem:[%s1 + $0x18] sm:$0xff]
  %v22 = vld [vmem:[%s2] sm:$0x1]
  %v24 = vlaneseq
  %v25 = vshrl.u32 %v24, 7
  %v26 = vsub.s32 0, %v25
  %v27 = vrot.slane %v22, %v26
  %vm29 = vcmask 261120
  %v31 = vsel %vm29, %v17, 0
  %33 = vmatprep.subr.mxu0 0.0
  %34 = vmatpush1.msra.mxu0 0.0
  %35 = vmatprep.subr.mxu0 0.0
  %36 = vmatpush1.msra.mxu0 0.0
  %37 = vmatprep.subr.mxu0 0.0
  %38 = vmatpush1.msra.mxu0 0.0
  %39 = vmatprep.subr.mxu0 0.0
  %40 = vmatpush1.msra.mxu0 0.0
  %41 = vmatprep.subr.mxu0 0.0
  %42 = vmatpush1.msra.mxu0 0.0
  %43 = vmatprep.subr.mxu0 0.0
  %44 = vmatpush1.msra.mxu0 0.0
  %45 = vmatprep.subr.mxu0 0.0
  %46 = vmatpush1.msra.mxu0 0.0
  %47 = vmatprep.subr.mxu0 0.0
  %48 = vmatpush1.msra.mxu0 0.0
  %49 = vmatprep.subr.mxu0 0.0
  %50 = vmatpush1.msra.mxu0 0.0
  %51 = vmatprep.subr.mxu0 0.0
  %52 = vmatpush1.msra.mxu0 0.0
  %53 = vmatprep.subr.mxu0 0.0
  %54 = vmatpush1.msra.mxu0 0.0
  %55 = vmatprep.subr.mxu0 0.0
  %56 = vmatpush1.msra.mxu0 0.0
  %57 = vmatprep.subr.mxu0 0.0
  %58 = vmatpush1.msra.mxu0 %v21
  %59 = vmatprep.subr.mxu0 0.0
  %60 = vmatpush1.msra.mxu0 %v20
  %61 = vmatprep.subr.mxu0 0.0
  %62 = vmatpush1.msra.mxu0 %v19
  %63 = vmatprep.subr.mxu0 0.0
  %64 = vmatpush1.msra.mxu0 %v18
  %65 = vmatprep.subr.mxu0 0.0
  %66 = vmatpush2.msra.mxu0 0.0
  %67 = vmatprep.subr.mxu0 0.0
  %68 = vmatpush2.msra.mxu0 0.0
  %69 = vmatprep.subr.mxu0 0.0
  %70 = vmatpush2.msra.mxu0 0.0
  %71 = vmatprep.subr.mxu0 0.0
  %72 = vmatpush2.msra.mxu0 0.0
  %73 = vmatprep.subr.mxu0 0.0
  %74 = vmatpush2.msra.mxu0 0.0
  %75 = vmatprep.subr.mxu0 0.0
  %76 = vmatpush2.msra.mxu0 0.0
  %77 = vmatprep.subr.mxu0 0.0
  %78 = vmatpush2.msra.mxu0 0.0
  %79 = vmatprep.subr.mxu0 0.0
  %80 = vmatpush2.msra.mxu0 0.0
  %81 = vmatprep.subr.mxu0 0.0
  %82 = vmatpush2.msra.mxu0 0.0
  %83 = vmatprep.subr.mxu0 0.0
  %84 = vmatpush2.msra.mxu0 0.0
  %85 = vmatprep.subr.mxu0 0.0
  %86 = vmatpush2.msra.mxu0 0.0
  %87 = vmatprep.subr.mxu0 0.0
  %88 = vmatpush2.msra.mxu0 0.0
  %89 = vmatprep.subr.mxu0 0.0
  %90 = vmatpush2.msra.mxu0 0.0
  %91 = vmatprep.subr.mxu0 0.0
  %92 = vmatpush2.msra.mxu0 0.0
  %93 = vmatprep.subr.mxu0 0.0
  %94 = vmatpush2.msra.mxu0 0.0
  %95 = vmatprep.subr.mxu0 0.0
  %96 = vmatpush2.msra.mxu0 0.0
  %97 = vmatprep.mubr.f32.mxu0 0.0
  %98 = vmatmul.mubr.f32.gmra.mxu0 %v31
  %v99 = vpop.f32.mrf.mxu0
  %v100 = vadd.f32 %v27, %v99
  %v101 = vpop.f32.mrf.mxu0
  %102 = vdwg.mxu0
  %vm103 = vcmask 130048
  %v104 = vsel %vm103, %v100, -inf
  %105 = vmax.xlane.f32.xlu0 %v104
  %v106 = vpop.xlane.xlu0 %105
  %v107 = vsub.f32 %v100, %v106
  %v108 = vmul.f32 %v107, 1.442695
  %v109 = vpow.pop %v108
  %v110 = vsel %vm103, %v109, 0.0
  %111 = vadd.xlane.f32.xlu0 %v110
  %v112 = vpop.xlane.xlu0 %111
  %v113 = vrcp.pop %v112
  %v114 = vmul.f32 %v109, %v113
  %v115 = vld [vmem:[%s3] sm:$0xff]
  %v116 = vld [vmem:[%s3 + $0x8] sm:$0xff]
  %v118 = vsel %vm103, %v114, 0
  %120 = vmatprep.subr.mxu0 0.0
  %121 = vmatpush1.msra.mxu0 0.0
  %122 = vmatprep.subr.mxu0 0.0
  %123 = vmatpush1.msra.mxu0 0.0
  %124 = vmatprep.subr.mxu0 0.0
  %125 = vmatpush1.msra.mxu0 0.0
  %126 = vmatprep.subr.mxu0 0.0
  %127 = vmatpush1.msra.mxu0 0.0
  %128 = vmatprep.subr.mxu0 0.0
  %129 = vmatpush1.msra.mxu0 0.0
  %130 = vmatprep.subr.mxu0 0.0
  %131 = vmatpush1.msra.mxu0 0.0
  %132 = vmatprep.subr.mxu0 0.0
  %133 = vmatpush1.msra.mxu0 0.0
  %134 = vmatprep.subr.mxu0 0.0
  %135 = vmatpush1.msra.mxu0 0.0
  %136 = vmatprep.subr.mxu0 0.0
  %137 = vmatpush1.msra.mxu0 0.0
  %138 = vmatprep.subr.mxu0 0.0
  %139 = vmatpush1.msra.mxu0 0.0
  %140 = vmatprep.subr.mxu0 0.0
  %141 = vmatpush1.msra.mxu0 0.0
  %142 = vmatprep.subr.mxu0 0.0
  %143 = vmatpush1.msra.mxu0 0.0
  %144 = vmatprep.subr.mxu0 0.0
  %145 = vmatpush1.msra.mxu0 0.0
  %146 = vmatprep.subr.mxu0 0.0
  %147 = vmatpush1.msra.mxu0 0.0
  %148 = vmatprep.subr.mxu0 0.0
  %149 = vmatpush1.msra.mxu0 %v116
  %150 = vmatprep.subr.mxu0 0.0
  %151 = vmatpush1.msra.mxu0 %v115
  %152 = vmatprep.subr.mxu0 0.0
  %153 = vmatpush2.msra.mxu0 0.0
  %154 = vmatprep.subr.mxu0 0.0
  %155 = vmatpush2.msra.mxu0 0.0
  %156 = vmatprep.subr.mxu0 0.0
  %157 = vmatpush2.msra.mxu0 0.0
  %158 = vmatprep.subr.mxu0 0.0
  %159 = vmatpush2.msra.mxu0 0.0
  %160 = vmatprep.subr.mxu0 0.0
  %161 = vmatpush2.msra.mxu0 0.0
  %162 = vmatprep.subr.mxu0 0.0
  %163 = vmatpush2.msra.mxu0 0.0
  %164 = vmatprep.subr.mxu0 0.0
  %165 = vmatpush2.msra.mxu0 0.0
  %166 = vmatprep.subr.mxu0 0.0
  %167 = vmatpush2.msra.mxu0 0.0
  %168 = vmatprep.subr.mxu0 0.0
  %169 = vmatpush2.msra.mxu0 0.0
  %170 = vmatprep.subr.mxu0 0.0
  %171 = vmatpush2.msra.mxu0 0.0
  %172 = vmatprep.subr.mxu0 0.0
  %173 = vmatpush2.msra.mxu0 0.0
  %174 = vmatprep.subr.mxu0 0.0
  %175 = vmatpush2.msra.mxu0 0.0
  %176 = vmatprep.subr.mxu0 0.0
  %177 = vmatpush2.msra.mxu0 0.0
  %178 = vmatprep.subr.mxu0 0.0
  %179 = vmatpush2.msra.mxu0 0.0
  %180 = vmatprep.subr.mxu0 0.0
  %181 = vmatpush2.msra.mxu0 0.0
  %182 = vmatprep.subr.mxu0 0.0
  %183 = vmatpush2.msra.mxu0 0.0
  %184 = vmatprep.mubr.f32.mxu0 0.0
  %185 = vmatmul.mubr.f32.gmra.mxu0 %v118
  %v186 = vpop.f32.mrf.mxu0
  %v187 = vadd.f32 0.0, %v186
  %v188 = vpop.f32.mrf.mxu0
  %189 = vdwg.mxu0
  %vm190 = vcmask 785408
  %191 = vst.msk [vmem:[%s4] sm:$0xff] %vm190, %v187
  // Predicated region
  $region18: #{memory_reformulator_forward.1} parent=0 // pred_check
    _
  $region19: #{memory_reformulator_forward.1} parent=0 // pred_check_branch
    %193 = sbr.rel (0) target = $region21
  $region20: #{memory_reformulator_forward.1} parent=0 // pred_region
    _
  $region21: #{memory_reformulator_forward.1} parent=0 // pred_fallthru
    _
  // Predicated region
  $region22: #{memory_reformulator_forward.1} parent=0 // pred_check
    _
  $region23: #{memory_reformulator_forward.1} parent=0 // pred_check_branch
    %195 = sbr.rel (0) target = $region25
  $region24: #{memory_reformulator_forward.1} parent=0 // pred_region
    _
  $region25: #{memory_reformulator_forward.1} parent=0 // pred_fallthru
    _

</llo_original>
